<compile_context>
chip_gen: v5e
topology: v5e:2x2
jax: 0.10.0
libtpu: 0.0.40
codegen_flags: <defaults>
</compile_context>

<pallas_src>
import jax
import jax.numpy as jnp
from jax.experimental import pallas as pl
from jax.experimental.pallas import tpu as pltpu

_LANE = 128
_TARGET_TILE_BYTES = 4 * 1024 * 1024      # ~4 MiB per tile (input side)
_VMEM_HEADROOM_BYTES = 8 * 1024 * 1024    # slack on top of the 4x-tile pipeline footprint
_MIN_KERNEL_BYTES = 2 * 1024 * 1024       # below this, fused jnp beats pallas_call overhead


def _scale_exp_kernel(scale_ref, x_ref, o_ref):
    # scale_ref: (1,) float32 in SMEM; x_ref/o_ref: (tile_rows, width) in VMEM.
    s = scale_ref[0]
    x = x_ref[...]
    # Multiply + exp in f32 (exp uses the EUP slot, effectively free); cast on store.
    o_ref[...] = jnp.exp(x.astype(jnp.float32) * s).astype(o_ref.dtype)


def _choose_width(n):
    # Largest lane-dense width that divides n (copy-free flatten), else None.
    for w in (1024, 512, 256, 128):
        if n % w == 0:
            return w
    return None


def _sublane_multiple(dtype):
    # Packed-sublane granularity: 32-bit -> 8, 16-bit -> 16, 8-bit -> 32.
    return 8 * (4 // jnp.dtype(dtype).itemsize)


def _max_tile_bytes():
    # Generation-aware cap: keep the full pipeline footprint (2 input bufs +
    # 2 output bufs = 4x tile) at <= ~1/3 of physical VMEM (v7x: 64 MiB/TC).
    target = _TARGET_TILE_BYTES
    try:
        cap = pltpu.get_tpu_info().vmem_capacity_bytes
        target = min(target, max(512 * 1024, cap // 12))
    except Exception:
        pass
    return target


def _choose_tile_rows(rows, width, itemsize, sublane):
    t = _max_tile_bytes() // (width * itemsize)
    t = max(sublane, (t // sublane) * sublane)
    if t >= rows:
        return rows  # full-extent block is always legal
    return t


def _scale_exp_2d(x2d, scale_f32):
    rows, width = x2d.shape
    itemsize = x2d.dtype.itemsize
    tile_rows = _choose_tile_rows(rows, width, itemsize, _sublane_multiple(x2d.dtype))
    grid = (pl.cdiv(rows, tile_rows),)
    n = rows * width

    # 2 input buffers + 2 output buffers (auto double-buffering) + headroom.
    footprint = 4 * tile_rows * width * itemsize
    vmem_limit = min(footprint + _VMEM_HEADROOM_BYTES, 100 * 1024 * 1024)

    return pl.pallas_call(
        _scale_exp_kernel,
        out_shape=jax.ShapeDtypeStruct((rows, width), x2d.dtype),
        grid_spec=pl.GridSpec(
            grid=grid,
            in_specs=[
                pl.BlockSpec(memory_space=pltpu.SMEM),               # scale scalar
                pl.BlockSpec((tile_rows, width), lambda i: (i, 0)),  # input row tile
            ],
            out_specs=pl.BlockSpec((tile_rows, width), lambda i: (i, 0)),
        ),
        compiler_params=pltpu.CompilerParams(
            dimension_semantics=("parallel",),
            vmem_limit_bytes=vmem_limit,
        ),
        cost_estimate=pl.CostEstimate(
            flops=n,
            transcendentals=n,
            bytes_accessed=2 * n * itemsize,
        ),
    )(scale_f32, x2d)


def scale_exp(x: jax.Array, scale: jax.Array, *, min_kernel_bytes=_MIN_KERNEL_BYTES) -> jax.Array:
    """Computes exp(x * scale) elementwise. `scale` is a shape-(1,) learned scalar."""
    orig_shape = x.shape
    n = x.size
    scale_f32 = jnp.reshape(scale.astype(jnp.float32), (1,))

    width = _choose_width(n)
    small = n * x.dtype.itemsize < min_kernel_bytes
    if width is None or small:
        # Ragged (size not a multiple of 128) or tiny input: a single fused XLA
        # pass (read n + write n) beats any pad/concat scheme and avoids the
        # pallas_call fixed overhead / fusion barrier for small arrays.
        return jnp.exp(x.astype(jnp.float32) * scale_f32[0]).astype(x.dtype)

    # Copy-free path: flatten straight into a lane-dense slab.
    x2d = jnp.reshape(x, (n // width, width))
    out2d = _scale_exp_2d(x2d, scale_f32)
    return jnp.reshape(out2d, orig_shape)


if __name__ == "__main__":
    key = jax.random.PRNGKey(0)
    # NCHW input, matching PyTorch conv-style layout conventions.
    x = jax.random.normal(key, (2, 4, 16, 16), dtype=jnp.float32)

    # Deterministic parameter init, mirroring ScaleExp(init_value=1.0).
    scale = jnp.array([1.0], dtype=jnp.float32)

    # Force the Pallas path even though this example is tiny (so the kernel is
    # actually exercised), and also check the default small-input dispatch.
    out_kernel = scale_exp(x, scale, min_kernel_bytes=0)
    jax.block_until_ready(out_kernel)
    out_default = scale_exp(x, scale)
    jax.block_until_ready(out_default)

    # Sanity check against plain JAX reference.
    ref = jnp.exp(x * scale[0])
    assert out_kernel.shape == x.shape and out_kernel.dtype == x.dtype
    assert jnp.allclose(out_kernel, ref, rtol=1e-6, atol=1e-6)
    assert jnp.allclose(out_default, ref, rtol=1e-6, atol=1e-6)

    print("KERNEL_OK")
</pallas_src>

<mosaic_0001>
module attributes {stable_mosaic.version = 11 : i64} {
  func.func @_scale_exp_kernel(%arg0: i32, %arg1: memref<1xf32, #tpu.memory_space<smem>>, %arg2: memref<2x1024xf32, #tpu.memory_space<vmem>>, %arg3: memref<2x1024xf32, #tpu.memory_space<vmem>>) attributes {dimension_semantics = [#tpu.dimension_semantics<parallel>], iteration_bounds = array<i64: 1>, scalar_prefetch = 0 : i64, scratch_operands = 0 : i64, tpu.core_type = #tpu.core_type<tc>, window_params = [{transform_indices = @transform_0, window_bounds = array<i64: 1>}, {transform_indices = @transform_1, window_bounds = array<i64: 2, 1024>}, {transform_indices = @transform_2, window_bounds = array<i64: 2, 1024>}]} {
    %c0 = arith.constant 0 : index
    %0 = memref.load %arg1[%c0] : memref<1xf32, #tpu.memory_space<smem>>
    %c0_0 = arith.constant 0 : index
    %c0_1 = arith.constant 0 : index
    %1 = vector.load %arg2[%c0_0, %c0_1] : memref<2x1024xf32, #tpu.memory_space<vmem>>, vector<2x1024xf32>
    %2 = vector.broadcast %0 : f32 to vector<2x1024xf32>
    %3 = arith.mulf %1, %2 : vector<2x1024xf32>
    %4 = math.exp %3 : vector<2x1024xf32>
    %c0_2 = arith.constant 0 : index
    %c0_3 = arith.constant 0 : index
    %5 = vector.load %arg3[%c0_2, %c0_3] : memref<2x1024xf32, #tpu.memory_space<vmem>>, vector<2x1024xf32>
    tpu.vector_store %arg3[%c0_2, %c0_3], %4 {strides = array<i32>} : memref<2x1024xf32, #tpu.memory_space<vmem>>, vector<2x1024xf32>,
    return
  }
  func.func @transform_0(%arg0: i32) -> i32 {
    %c0_i32 = arith.constant 0 : i32
    %c0_i32_0 = arith.constant 0 : i32
    return %c0_i32 : i32
  }
  func.func @transform_1(%arg0: i32) -> (i32, i32) {
    %c0_i32 = arith.constant 0 : i32
    %c0_i32_0 = arith.constant 0 : i32
    return %arg0, %c0_i32 : i32, i32
  }
  func.func @transform_2(%arg0: i32) -> (i32, i32) {
    %c0_i32 = arith.constant 0 : i32
    %c0_i32_0 = arith.constant 0 : i32
    return %arg0, %c0_i32 : i32, i32
  }
}

</mosaic_0001>

<llo_original>
// kernel: tpu_custom_call.1
$region0: #{tpu_custom_call.1}
  #allocation0 [shape = 'u32[]', space=smem, size = 0x4, offset = 0x4, fixed_abs, tag = 'smem constant byte address 0x4 - core index']
  #allocation1 [shape = 'u32[72,128]{1,0:T(1,128)}', space=vmem, size = 0x9000, scoped, tag = 'internal scratch']
  #allocation2 [shape = 'f32[1]{0:T(128)S(6)}', space=smem, size = 0x200, scoped, tag = 'scoped memory for tpu_custom_call.1']
  %s0 = inlined_call_operand.<no memory space> [shape: f32[1], index: 0, kind: input, shape index: {}]
  %s1 = inlined_call_operand.hbm [shape: f32[2,1024], index: 1, kind: input, shape index: {}]
  %s2 = inlined_call_operand.hbm [shape: f32[2,1024], index: 2, kind: output, shape index: {}]
  %s3 = sld [smem:[#allocation0]]
  $region22: #{tpu_custom_call.1} parent=0
    _
  %s5 = ssub.s32 1, %s3
  %s6 = scalar_select 0, %s5, %s3
  %7 = sst [smem:[#allocation2]] %s0
  $region1: #{tpu_custom_call.1} parent=0
    #allocation3 [shape = 'u8[8192]{0}', space=vmem, size = 0x2000, scoped, tag = 'input window, operand 1, single buffered']
    #allocation4 [shape = 's32[1]{0}', space=sflag, size = 0x4, scoped, tag = 'scoped memory for tpu_custom_call.1']
    #allocation5 [shape = 's32[1]{0}', space=sflag, size = 0x4, scoped, tag = 'scoped memory for tpu_custom_call.1']
    #allocation6 [shape = 'u8[8192]{0}', space=vmem, size = 0x2000, scoped, tag = 'output window, operand 0, single buffered']
    %8 = vsyncpa [#allocation4], 0
    %9 = vsyncpa [#allocation5], 0
    // Predicated region
    $region2: #{tpu_custom_call.1} parent=1 // pred_check
      _
    $region3: #{tpu_custom_call.1} parent=1 // pred_check_branch
      %11 = sbr.rel (0) target = $region5
    $region4: #{tpu_custom_call.1} parent=1 // pred_region
      _
    $region5: #{tpu_custom_call.1} parent=1 // pred_fallthru
      _
    // Predicated region
    $region6: #{tpu_custom_call.1} parent=1 // pred_check
      _
    $region7: #{tpu_custom_call.1} parent=1 // pred_check_branch
      %13 = sbr.rel (0) target = $region9
    $region8: #{tpu_custom_call.1} parent=1 // pred_region
      %15 = vsyncadd [#allocation4], 0
      %s17 = sshll.u32 %s1, 4
      %s18 = int_to_ptr.hbm [resolvable:$true] %s17
      %s19 = sshll.u32 [#allocation3], 4
      %s20 = int_to_ptr.vmem [resolvable:$true] %s19
      %22 = dma.hbm_to_vmem [thread:$0]  %s18, 256, %s20, [#allocation4]
    $region9: #{tpu_custom_call.1} parent=1 // pred_fallthru
      _
    // Predicated region
    $region10: #{tpu_custom_call.1} parent=1 // pred_check
      _
    $region11: #{tpu_custom_call.1} parent=1 // pred_check_branch
      %24 = sbr.rel (0) target = $region13
    $region12: #{tpu_custom_call.1} parent=1 // pred_region
      %26 = dma.done [#allocation4], 256
    $region13: #{tpu_custom_call.1} parent=1 // pred_fallthru
      _
    %s27 = sld [smem:[#allocation2]]
    %v28 = vld [vmem:[#allocation3] sm:$0xff]
    %v29 = vld [vmem:[#allocation3 + $0x8] sm:$0xff]
    %v30 = vstv %s27
    %v31 = vmul.f32 %v28, %v30
    %v32 = vmul.f32 %v29, %v30
    %v33 = vmul.f32 %v31, 1.442695
    %v34 = vpow.pop %v33
    %v35 = vmul.f32 %v32, 1.442695
    %v36 = vpow.pop %v35
    %37 = vst [vmem:[#allocation6] sm:$0xff] %v34
    %38 = vst [vmem:[#allocation6 + $0x8] sm:$0xff] %v36
    // Predicated region
    $region14: #{tpu_custom_call.1} parent=1 // pred_check
      _
    $region15: #{tpu_custom_call.1} parent=1 // pred_check_branch
      %40 = sbr.rel (0) target = $region17
    $region16: #{tpu_custom_call.1} parent=1 // pred_region
      %42 = vsyncadd [#allocation5], 0
      %s44 = sshll.u32 [#allocation6], 4
      %s45 = int_to_ptr.vmem [resolvable:$true] %s44
      %s46 = sshll.u32 %s2, 4
      %s47 = int_to_ptr.hbm [resolvable:$true] %s46
      %49 = dma.vmem_to_hbm [thread:$0]  %s45, 256, %s47, [#allocation5]
    $region17: #{tpu_custom_call.1} parent=1 // pred_fallthru
      _
    // Predicated region
    $region18: #{tpu_custom_call.1} parent=1 // pred_check
      _
    $region19: #{tpu_custom_call.1} parent=1 // pred_check_branch
      %51 = sbr.rel (0) target = $region21
    $region20: #{tpu_custom_call.1} parent=1 // pred_region
      %53 = dma.done [#allocation5], 256
    $region21: #{tpu_custom_call.1} parent=1 // pred_fallthru
      _
    %54 = vsyncpa [#allocation4], 1
    %55 = vsyncpa [#allocation5], 1

</llo_original>
